<compile_context>
chip_gen: v5e
topology: v5e:2x2
jax: 0.10.0
libtpu: 0.0.40
codegen_flags: <defaults>
</compile_context>

<pallas_src>
import functools

import jax
import jax.numpy as jnp
from jax.experimental import pallas as pl
from jax.experimental.pallas import tpu as pltpu

EPS = 1e-5  # PyTorch BatchNorm2d default eps


def _conv_stats_kernel(x_ref, wb_ref, y_ref, stats_ref, xp_ref, *, H, W, Cin, Cout):
    """Pass 1: conv3x3 (pad=1) + partial BN statistics for one image.

    x_ref:     (1, H, W*Cin)        channels-last image rows
    wb_ref:    (3, W*Cin, W*Cout)   banded (block-Toeplitz) weights, one per ky
    y_ref:     (1, H, W*Cout)       conv output (lane-dense slab)
    stats_ref: (1, 2, W*Cout)       [sum over rows ; sum of squares over rows]
    xp_ref:    (H+2, W*Cin)         VMEM scratch holding the zero row-halo
    """
    WCin = W * Cin
    WCout = W * Cout

    # Rebuild the zero row-padding in VMEM (no padded copy ever touches HBM).
    zero_row = jnp.zeros((1, WCin), jnp.float32)
    xp_ref[0:1, :] = zero_row
    xp_ref[H + 1:H + 2, :] = zero_row
    xp_ref[1:H + 1, :] = x_ref[0]

    # Conv2d: 3 banded matmuls (one per kernel row ky).  Column padding and the
    # 3 kx taps are folded into each (W*Cin, W*Cout) banded weight matrix.
    acc = jnp.zeros((H, WCout), jnp.float32)
    for dy in range(3):  # unrolled at trace time
        acc = acc + jnp.dot(xp_ref[dy:dy + H, :], wb_ref[dy],
                            preferred_element_type=jnp.float32)
    y_ref[0] = acc

    # Partial BatchNorm statistics (reduce over image rows here; the wrapper
    # finishes the reduction over batch and width).
    stats_ref[0, 0:1, :] = jnp.sum(acc, axis=0, keepdims=True)
    stats_ref[0, 1:2, :] = jnp.sum(acc * acc, axis=0, keepdims=True)


def _bn_relu_kernel(y_ref, p_ref, out_ref):
    """Pass 2: y * scale + shift, ReLU (per image).

    y_ref:   (1, H, W*Cout)
    p_ref:   (2, W*Cout)   packed [scale ; shift], already tiled over W
    out_ref: (1, H, W*Cout)
    """
    y = y_ref[0]                                    # (H, W*Cout)
    out_ref[0] = jnp.maximum(y * p_ref[0:1, :] + p_ref[1:2, :], 0.0)


def conv_block(x_nchw, w_oihw, b, gamma, beta, *, eps=EPS):
    """NCHW in, NCHW out — matches the PyTorch ConvBlock forward (training BN)."""
    N, Cin, H, W = x_nchw.shape
    Cout = w_oihw.shape[0]
    WCin, WCout = W * Cin, W * Cout

    # NCHW -> channels-last rows (N, H, W*Cin).  One XLA transpose; no HBM pad.
    x_rows = jnp.transpose(x_nchw, (0, 2, 3, 1)).reshape(N, H, WCin)
    x_rows = x_rows.astype(jnp.float32)

    # Banded (block-Toeplitz) weights:
    #   wb[ky, p*Cin+ci, w*Cout+co] = W[co, ci, ky, kx]   with p = w + kx - 1
    # (zero outside the band -> implicit zero padding along width).
    w_hwio = jnp.transpose(w_oihw, (2, 3, 1, 0)).astype(jnp.float32)  # (3,3,Cin,Cout)
    p_idx = jnp.arange(W)
    w_idx = jnp.arange(W)
    d_idx = jnp.arange(3)
    sel = (p_idx[:, None, None] ==
           w_idx[None, :, None] + d_idx[None, None, :] - 1).astype(jnp.float32)  # (W,W,3)
    wb = jnp.einsum("pwd,ydio->ypiwo", sel, w_hwio).reshape(3, WCin, WCout)

    kernel1 = functools.partial(_conv_stats_kernel, H=H, W=W, Cin=Cin, Cout=Cout)
    y_rows, stats = pl.pallas_call(
        kernel1,
        out_shape=(
            jax.ShapeDtypeStruct((N, H, WCout), jnp.float32),
            jax.ShapeDtypeStruct((N, 2, WCout), jnp.float32),
        ),
        grid=(N,),
        in_specs=[
            pl.BlockSpec((1, H, WCin), lambda n: (n, 0, 0)),
            pl.BlockSpec((3, WCin, WCout), lambda n: (0, 0, 0)),
        ],
        out_specs=(
            pl.BlockSpec((1, H, WCout), lambda n: (n, 0, 0)),
            pl.BlockSpec((1, 2, WCout), lambda n: (n, 0, 0)),
        ),
        scratch_shapes=[pltpu.VMEM((H + 2, WCin), jnp.float32)],
        compiler_params=pltpu.CompilerParams(dimension_semantics=("parallel",)),
    )(x_rows, wb)

    # Finalize BatchNorm statistics (tiny per-channel reduction, stays in XLA).
    s = stats[:, 0, :].reshape(N, W, Cout).sum(axis=(0, 1))          # (Cout,)
    ss = stats[:, 1, :].reshape(N, W, Cout).sum(axis=(0, 1))         # (Cout,)
    cnt = jnp.float32(N * H * W)
    mean = s / cnt
    var = jnp.maximum(ss / cnt - mean * mean, 0.0)                   # biased batch var
    scale = gamma.astype(jnp.float32) * jax.lax.rsqrt(var + eps)
    shift = beta.astype(jnp.float32) - mean * scale
    # NOTE: conv bias `b` is intentionally NOT used — a per-channel bias added
    # before training-mode BatchNorm is subtracted back out by the batch mean.
    del b
    sc_sh = jnp.stack([jnp.tile(scale, W), jnp.tile(shift, W)], axis=0)  # (2, W*Cout)

    out_rows = pl.pallas_call(
        _bn_relu_kernel,
        out_shape=jax.ShapeDtypeStruct((N, H, WCout), jnp.float32),
        grid=(N,),
        in_specs=[
            pl.BlockSpec((1, H, WCout), lambda n: (n, 0, 0)),
            pl.BlockSpec((2, WCout), lambda n: (0, 0)),
        ],
        out_specs=pl.BlockSpec((1, H, WCout), lambda n: (n, 0, 0)),
        compiler_params=pltpu.CompilerParams(dimension_semantics=("parallel",)),
    )(y_rows, sc_sh)

    # (N, H, W*Cout) -> NCHW
    return jnp.transpose(out_rows.reshape(N, H, W, Cout), (0, 3, 1, 2))


def reference(x_nchw, w_oihw, b, gamma, beta):
    """Pure-JAX reference mirroring the PyTorch forward (training-mode BN)."""
    y = jax.lax.conv_general_dilated(
        x_nchw.astype(jnp.float32), w_oihw.astype(jnp.float32),
        window_strides=(1, 1), padding=((1, 1), (1, 1)),
        dimension_numbers=("NCHW", "OIHW", "NCHW"))
    y = y + b.reshape(1, -1, 1, 1)
    mean = jnp.mean(y, axis=(0, 2, 3), keepdims=True)
    var = jnp.mean((y - mean) ** 2, axis=(0, 2, 3), keepdims=True)
    y = (y - mean) * jax.lax.rsqrt(var + EPS) * gamma.reshape(1, -1, 1, 1) \
        + beta.reshape(1, -1, 1, 1)
    return jnp.maximum(y, 0.0)


if __name__ == "__main__":
    N, Cin, Cout, H, W = 2, 4, 8, 16, 16

    key = jax.random.PRNGKey(0)
    kx, kw, kb = jax.random.split(key, 3)
    x = jax.random.normal(kx, (N, Cin, H, W), dtype=jnp.float32)
    # Deterministic synthetic parameters (shapes match nn.Conv2d / nn.BatchNorm2d).
    w = 0.1 * jax.random.normal(kw, (Cout, Cin, 3, 3), dtype=jnp.float32)
    b = 0.1 * jax.random.normal(kb, (Cout,), dtype=jnp.float32)
    gamma = jnp.ones((Cout,), dtype=jnp.float32)   # BN weight init
    beta = jnp.zeros((Cout,), dtype=jnp.float32)   # BN bias init

    conv_block_jit = jax.jit(conv_block)
    out = jax.block_until_ready(conv_block_jit(x, w, b, gamma, beta))
    ref = jax.block_until_ready(reference(x, w, b, gamma, beta))

    assert out.shape == (N, Cout, H, W)
    assert jnp.allclose(out, ref, atol=5e-4, rtol=5e-4), \
        float(jnp.max(jnp.abs(out - ref)))
    print("KERNEL_OK")
</pallas_src>

<mosaic_0001>
module attributes {stable_mosaic.version = 11 : i64} {
  func.func @_conv_stats_kernel(%arg0: i32, %arg1: memref<1x16x64xf32, #tpu.memory_space<vmem>>, %arg2: memref<3x64x128xf32, #tpu.memory_space<vmem>>, %arg3: memref<1x16x128xf32, #tpu.memory_space<vmem>>, %arg4: memref<1x2x128xf32, #tpu.memory_space<vmem>>, %arg5: memref<18x64xf32, #tpu.memory_space<vmem>>) attributes {dimension_semantics = [#tpu.dimension_semantics<parallel>], iteration_bounds = array<i64: 2>, scalar_prefetch = 0 : i64, scratch_operands = 1 : i64, tpu.core_type = #tpu.core_type<tc>, window_params = [{transform_indices = @transform_0, window_bounds = array<i64: 1, 16, 64>}, {pipeline_mode = #tpu.pipeline_mode<synchronous>, transform_indices = @transform_1, window_bounds = array<i64: 3, 64, 128>}, {transform_indices = @transform_2, window_bounds = array<i64: 1, 16, 128>}, {transform_indices = @transform_3, window_bounds = array<i64: 1, 2, 128>}]} {
    %cst = arith.constant 0.000000e+00 : f32
    %0 = vector.broadcast %cst : f32 to vector<1x64xf32>
    %c0 = arith.constant 0 : index
    %c0_0 = arith.constant 0 : index
    %1 = vector.load %arg5[%c0, %c0_0] : memref<18x64xf32, #tpu.memory_space<vmem>>, vector<1x64xf32>
    tpu.vector_store %arg5[%c0, %c0_0], %0 {strides = array<i32>} : memref<18x64xf32, #tpu.memory_space<vmem>>, vector<1x64xf32>,
    %c17 = arith.constant 17 : index
    %c0_1 = arith.constant 0 : index
    %2 = vector.load %arg5[%c17, %c0_1] : memref<18x64xf32, #tpu.memory_space<vmem>>, vector<1x64xf32>
    tpu.vector_store %arg5[%c17, %c0_1], %0 {strides = array<i32>} : memref<18x64xf32, #tpu.memory_space<vmem>>, vector<1x64xf32>,
    %c0_2 = arith.constant 0 : index
    %c0_3 = arith.constant 0 : index
    %c0_4 = arith.constant 0 : index
    %3 = vector.load %arg1[%c0_2, %c0_3, %c0_4] : memref<1x16x64xf32, #tpu.memory_space<vmem>>, vector<1x16x64xf32>
    %4 = vector.shape_cast %3 : vector<1x16x64xf32> to vector<16x64xf32>
    %c1 = arith.constant 1 : index
    %c0_5 = arith.constant 0 : index
    %5 = vector.load %arg5[%c1, %c0_5] : memref<18x64xf32, #tpu.memory_space<vmem>>, vector<16x64xf32>
    tpu.vector_store %arg5[%c1, %c0_5], %4 {strides = array<i32>} : memref<18x64xf32, #tpu.memory_space<vmem>>, vector<16x64xf32>,
    %cst_6 = arith.constant 0.000000e+00 : f32
    %6 = vector.broadcast %cst_6 : f32 to vector<16x128xf32>
    %c0_7 = arith.constant 0 : index
    %c0_8 = arith.constant 0 : index
    %7 = vector.load %arg5[%c0_7, %c0_8] : memref<18x64xf32, #tpu.memory_space<vmem>>, vector<16x64xf32>
    %c0_9 = arith.constant 0 : index
    %c0_10 = arith.constant 0 : index
    %c0_11 = arith.constant 0 : index
    %8 = vector.load %arg2[%c0_9, %c0_10, %c0_11] : memref<3x64x128xf32, #tpu.memory_space<vmem>>, vector<1x64x128xf32>
    %9 = vector.shape_cast %8 : vector<1x64x128xf32> to vector<64x128xf32>
    %cst_12 = arith.constant dense<0.000000e+00> : vector<16x128xf32>
    %10 = tpu.matmul %7, %9, %cst_12 {dimension_numbers = #tpu.dot_dimension_numbers<[1], [0], [0], [1], [0, 0, 1, 1], [], []>} : vector<16x64xf32>, vector<64x128xf32>, vector<16x128xf32> -> vector<16x128xf32>
    %11 = arith.addf %6, %10 : vector<16x128xf32>
    %c1_13 = arith.constant 1 : index
    %c0_14 = arith.constant 0 : index
    %12 = vector.load %arg5[%c1_13, %c0_14] : memref<18x64xf32, #tpu.memory_space<vmem>>, vector<16x64xf32>
    %c1_15 = arith.constant 1 : index
    %c0_16 = arith.constant 0 : index
    %c0_17 = arith.constant 0 : index
    %13 = vector.load %arg2[%c1_15, %c0_16, %c0_17] : memref<3x64x128xf32, #tpu.memory_space<vmem>>, vector<1x64x128xf32>
    %14 = vector.shape_cast %13 : vector<1x64x128xf32> to vector<64x128xf32>
    %cst_18 = arith.constant dense<0.000000e+00> : vector<16x128xf32>
    %15 = tpu.matmul %12, %14, %cst_18 {dimension_numbers = #tpu.dot_dimension_numbers<[1], [0], [0], [1], [0, 0, 1, 1], [], []>} : vector<16x64xf32>, vector<64x128xf32>, vector<16x128xf32> -> vector<16x128xf32>
    %16 = arith.addf %11, %15 : vector<16x128xf32>
    %c2 = arith.constant 2 : index
    %c0_19 = arith.constant 0 : index
    %17 = vector.load %arg5[%c2, %c0_19] : memref<18x64xf32, #tpu.memory_space<vmem>>, vector<16x64xf32>
    %c2_20 = arith.constant 2 : index
    %c0_21 = arith.constant 0 : index
    %c0_22 = arith.constant 0 : index
    %18 = vector.load %arg2[%c2_20, %c0_21, %c0_22] : memref<3x64x128xf32, #tpu.memory_space<vmem>>, vector<1x64x128xf32>
    %19 = vector.shape_cast %18 : vector<1x64x128xf32> to vector<64x128xf32>
    %cst_23 = arith.constant dense<0.000000e+00> : vector<16x128xf32>
    %20 = tpu.matmul %17, %19, %cst_23 {dimension_numbers = #tpu.dot_dimension_numbers<[1], [0], [0], [1], [0, 0, 1, 1], [], []>} : vector<16x64xf32>, vector<64x128xf32>, vector<16x128xf32> -> vector<16x128xf32>
    %21 = arith.addf %16, %20 : vector<16x128xf32>
    %c0_24 = arith.constant 0 : index
    %c0_25 = arith.constant 0 : index
    %c0_26 = arith.constant 0 : index
    %22 = vector.load %arg3[%c0_24, %c0_25, %c0_26] : memref<1x16x128xf32, #tpu.memory_space<vmem>>, vector<1x16x128xf32>
    %23 = vector.shape_cast %22 : vector<1x16x128xf32> to vector<16x128xf32>
    %24 = vector.shape_cast %21 : vector<16x128xf32> to vector<1x16x128xf32>
    tpu.vector_store %arg3[%c0_24, %c0_25, %c0_26], %24 {strides = array<i32>} : memref<1x16x128xf32, #tpu.memory_space<vmem>>, vector<1x16x128xf32>,
    %cst_27 = arith.constant dense<0.000000e+00> : vector<128xf32>
    %25 = vector.multi_reduction <add>, %21, %cst_27 [0] : vector<16x128xf32> to vector<128xf32>
    %26 = vector.shape_cast %25 : vector<128xf32> to vector<1x128xf32>
    %c0_28 = arith.constant 0 : index
    %c0_29 = arith.constant 0 : index
    %c0_30 = arith.constant 0 : index
    %27 = vector.load %arg4[%c0_28, %c0_29, %c0_30] : memref<1x2x128xf32, #tpu.memory_space<vmem>>, vector<1x1x128xf32>
    %28 = vector.shape_cast %27 : vector<1x1x128xf32> to vector<1x128xf32>
    %29 = vector.shape_cast %26 : vector<1x128xf32> to vector<1x1x128xf32>
    tpu.vector_store %arg4[%c0_28, %c0_29, %c0_30], %29 {strides = array<i32>} : memref<1x2x128xf32, #tpu.memory_space<vmem>>, vector<1x1x128xf32>,
    %30 = arith.mulf %21, %21 : vector<16x128xf32>
    %cst_31 = arith.constant dense<0.000000e+00> : vector<128xf32>
    %31 = vector.multi_reduction <add>, %30, %cst_31 [0] : vector<16x128xf32> to vector<128xf32>
    %32 = vector.shape_cast %31 : vector<128xf32> to vector<1x128xf32>
    %c0_32 = arith.constant 0 : index
    %c1_33 = arith.constant 1 : index
    %c0_34 = arith.constant 0 : index
    %33 = vector.load %arg4[%c0_32, %c1_33, %c0_34] : memref<1x2x128xf32, #tpu.memory_space<vmem>>, vector<1x1x128xf32>
    %34 = vector.shape_cast %33 : vector<1x1x128xf32> to vector<1x128xf32>
    %35 = vector.shape_cast %32 : vector<1x128xf32> to vector<1x1x128xf32>
    tpu.vector_store %arg4[%c0_32, %c1_33, %c0_34], %35 {strides = array<i32>} : memref<1x2x128xf32, #tpu.memory_space<vmem>>, vector<1x1x128xf32>,
    return
  }
  func.func @transform_0(%arg0: i32) -> (i32, i32, i32) {
    %c0_i32 = arith.constant 0 : i32
    %c0_i32_0 = arith.constant 0 : i32
    %c0_i32_1 = arith.constant 0 : i32
    return %arg0, %c0_i32, %c0_i32_0 : i32, i32, i32
  }
  func.func @transform_1(%arg0: i32) -> (i32, i32, i32) {
    %c0_i32 = arith.constant 0 : i32
    %c0_i32_0 = arith.constant 0 : i32
    %c0_i32_1 = arith.constant 0 : i32
    %c0_i32_2 = arith.constant 0 : i32
    return %c0_i32, %c0_i32_0, %c0_i32_1 : i32, i32, i32
  }
  func.func @transform_2(%arg0: i32) -> (i32, i32, i32) {
    %c0_i32 = arith.constant 0 : i32
    %c0_i32_0 = arith.constant 0 : i32
    %c0_i32_1 = arith.constant 0 : i32
    return %arg0, %c0_i32, %c0_i32_0 : i32, i32, i32
  }
  func.func @transform_3(%arg0: i32) -> (i32, i32, i32) {
    %c0_i32 = arith.constant 0 : i32
    %c0_i32_0 = arith.constant 0 : i32
    %c0_i32_1 = arith.constant 0 : i32
    return %arg0, %c0_i32, %c0_i32_0 : i32, i32, i32
  }
}

module attributes {stable_mosaic.version = 11 : i64} {
  func.func @_bn_relu_kernel(%arg0: i32, %arg1: memref<1x16x128xf32, #tpu.memory_space<vmem>>, %arg2: memref<2x128xf32, #tpu.memory_space<vmem>>, %arg3: memref<1x16x128xf32, #tpu.memory_space<vmem>>) attributes {dimension_semantics = [#tpu.dimension_semantics<parallel>], iteration_bounds = array<i64: 2>, scalar_prefetch = 0 : i64, scratch_operands = 0 : i64, tpu.core_type = #tpu.core_type<tc>, window_params = [{transform_indices = @transform_0, window_bounds = array<i64: 1, 16, 128>}, {pipeline_mode = #tpu.pipeline_mode<synchronous>, transform_indices = @transform_1, window_bounds = array<i64: 2, 128>}, {transform_indices = @transform_2, window_bounds = array<i64: 1, 16, 128>}]} {
    %c0 = arith.constant 0 : index
    %c0_0 = arith.constant 0 : index
    %c0_1 = arith.constant 0 : index
    %0 = vector.load %arg1[%c0, %c0_0, %c0_1] : memref<1x16x128xf32, #tpu.memory_space<vmem>>, vector<1x16x128xf32>
    %1 = vector.shape_cast %0 : vector<1x16x128xf32> to vector<16x128xf32>
    %c0_2 = arith.constant 0 : index
    %c0_3 = arith.constant 0 : index
    %2 = vector.load %arg2[%c0_2, %c0_3] : memref<2x128xf32, #tpu.memory_space<vmem>>, vector<1x128xf32>
    %3 = vector.broadcast %2 : vector<1x128xf32> to vector<16x128xf32>
    %4 = arith.mulf %1, %3 : vector<16x128xf32>
    %c1 = arith.constant 1 : index
    %c0_4 = arith.constant 0 : index
    %5 = vector.load %arg2[%c1, %c0_4] : memref<2x128xf32, #tpu.memory_space<vmem>>, vector<1x128xf32>
    %6 = vector.broadcast %5 : vector<1x128xf32> to vector<16x128xf32>
    %7 = arith.addf %4, %6 : vector<16x128xf32>
    %cst = arith.constant 0.000000e+00 : f32
    %8 = vector.broadcast %cst : f32 to vector<16x128xf32>
    %9 = arith.maximumf %7, %8 : vector<16x128xf32>
    %c0_5 = arith.constant 0 : index
    %c0_6 = arith.constant 0 : index
    %c0_7 = arith.constant 0 : index
    %10 = vector.load %arg3[%c0_5, %c0_6, %c0_7] : memref<1x16x128xf32, #tpu.memory_space<vmem>>, vector<1x16x128xf32>
    %11 = vector.shape_cast %10 : vector<1x16x128xf32> to vector<16x128xf32>
    %12 = vector.shape_cast %9 : vector<16x128xf32> to vector<1x16x128xf32>
    tpu.vector_store %arg3[%c0_5, %c0_6, %c0_7], %12 {strides = array<i32>} : memref<1x16x128xf32, #tpu.memory_space<vmem>>, vector<1x16x128xf32>,
    return
  }
  func.func @transform_0(%arg0: i32) -> (i32, i32, i32) {
    %c0_i32 = arith.constant 0 : i32
    %c0_i32_0 = arith.constant 0 : i32
    %c0_i32_1 = arith.constant 0 : i32
    return %arg0, %c0_i32, %c0_i32_0 : i32, i32, i32
  }
  func.func @transform_1(%arg0: i32) -> (i32, i32) {
    %c0_i32 = arith.constant 0 : i32
    %c0_i32_0 = arith.constant 0 : i32
    %c0_i32_1 = arith.constant 0 : i32
    return %c0_i32, %c0_i32_0 : i32, i32
  }
  func.func @transform_2(%arg0: i32) -> (i32, i32, i32) {
    %c0_i32 = arith.constant 0 : i32
    %c0_i32_0 = arith.constant 0 : i32
    %c0_i32_1 = arith.constant 0 : i32
    return %arg0, %c0_i32, %c0_i32_0 : i32, i32, i32
  }
}

</mosaic_0001>

<llo_original>
// kernel: tile.13
$region0: #{tile.13}
  #allocation0 [shape = 's32[1]{0}', space=sflag, size = 0x4, scoped, tag = 'scoped memory for tile.13']
  %s0 = inlined_call_operand.vmem [shape: f32[8], index: 0, kind: input, shape index: {}]
  %s1 = inlined_call_operand.vmem [shape: f32[16,8], index: 1, kind: output, shape index: {}]
  // Predicated region
  $region2: #{tile.13} parent=0 // pred_check
    _
  $region3: #{tile.13} parent=0 // pred_check_branch
    %3 = sbr.rel (0) target = $region5
  $region4: #{tile.13} parent=0 // pred_region
    _
  $region5: #{tile.13} parent=0 // pred_fallthru
    _
  %v4 = vld [vmem:[%s0] ss:$0 sm:$0xff]
  %5 = vst [vmem:[%s1] sm:$0xff] %v4
  %s6 = scalar_lea.vmem %s1, 8
  %7 = vst [vmem:[%s6] sm:$0xff] %v4

// kernel: tile.18
$region0: #{tile.18}
  %s0 = inlined_call_operand.vmem [shape: f32[16,8], index: 0, kind: input, shape index: {}]
  %s1 = inlined_call_operand.vmem [shape: f32[1,128], index: 1, kind: output, shape index: {}]
  $region1: #{tile.18} parent=0
    #allocation0 [shape = 'u8[4096]{0}', space=vmem, size = 0x1000, scoped, tag = 'scoped mem for output reshape']
    %v2 = vld [vmem:[%s0] sm:$0x1]
    %vm3 = vcmask 64512
    %4 = vst.msk [vmem:[#allocation0] sm:$0x1] %vm3, %v2
    %s5 = scalar_lea.vmem %s0, 15
    %v6 = vld [vmem:[%s5] sm:$0x1]
    %7 = vrot.lane.b32.xlu0 %v6, 120
    %v8 = vpop.permute.xlu0 %7
    %vm9 = vcmask 1048512
    %10 = vst.msk [vmem:[#allocation0] sm:$0x1] %vm9, %v8
    %s11 = scalar_lea.vmem %s0, 14
    %v12 = vld [vmem:[%s11] sm:$0x1]
    %13 = vrot.lane.b32.xlu0 %v12, 112
    %v14 = vpop.permute.xlu0 %13
    %vm15 = vcmask 982912
    %16 = vst.msk [vmem:[#allocation0] sm:$0x1] %vm15, %v14
    %s17 = scalar_lea.vmem %s0, 13
    %v18 = vld [vmem:[%s17] sm:$0x1]
    %19 = vrot.lane.b32.xlu0 %v18, 104
    %v20 = vpop.permute.xlu0 %19
    %vm21 = vcmask 917312
    %22 = vst.msk [vmem:[#allocation0] sm:$0x1] %vm21, %v20
    %s23 = scalar_lea.vmem %s0, 12
    %v24 = vld [vmem:[%s23] sm:$0x1]
    %25 = vrot.lane.b32.xlu0 %v24, 96
    %v26 = vpop.permute.xlu0 %25
    %vm27 = vcmask 851712
    %28 = vst.msk [vmem:[#allocation0] sm:$0x1] %vm27, %v26
    %s29 = scalar_lea.vmem %s0, 11
    %v30 = vld [vmem:[%s29] sm:$0x1]
    %31 = vrot.lane.b32.xlu0 %v30, 88
    %v32 = vpop.permute.xlu0 %31
    %vm33 = vcmask 786112
    %34 = vst.msk [vmem:[#allocation0] sm:$0x1] %vm33, %v32
    %s35 = scalar_lea.vmem %s0, 10
    %v36 = vld [vmem:[%s35] sm:$0x1]
    %37 = vrot.lane.b32.xlu0 %v36, 80
    %v38 = vpop.permute.xlu0 %37
    %vm39 = vcmask 720512
    %40 = vst.msk [vmem:[#allocation0] sm:$0x1] %vm39, %v38
    %s41 = scalar_lea.vmem %s0, 9
    %v42 = vld [vmem:[%s41] sm:$0x1]
    %43 = vrot.lane.b32.xlu0 %v42, 72
    %v44 = vpop.permute.xlu0 %43
    %vm45 = vcmask 654912
    %46 = vst.msk [vmem:[#allocation0] sm:$0x1] %vm45, %v44
    %s47 = scalar_lea.vmem %s0, 8
    %v48 = vld [vmem:[%s47] sm:$0x1]
    %49 = vrot.lane.b32.xlu0 %v48, 64
    %v50 = vpop.permute.xlu0 %49
    %vm51 = vcmask 589312
    %52 = vst.msk [vmem:[#allocation0] sm:$0x1] %vm51, %v50
    %s53 = scalar_lea.vmem %s0, 7
    %v54 = vld [vmem:[%s53] sm:$0x1]
    %55 = vrot.lane.b32.xlu0 %v54, 56
    %v56 = vpop.permute.xlu0 %55
    %vm57 = vcmask 523712
    %58 = vst.msk [vmem:[#allocation0] sm:$0x1] %vm57, %v56
    %s59 = scalar_lea.vmem %s0, 6
    %v60 = vld [vmem:[%s59] sm:$0x1]
    %61 = vrot.lane.b32.xlu0 %v60, 48
    %v62 = vpop.permute.xlu0 %61
    %vm63 = vcmask 458112
    %64 = vst.msk [vmem:[#allocation0] sm:$0x1] %vm63, %v62
    %s65 = scalar_lea.vmem %s0, 5
    %v66 = vld [vmem:[%s65] sm:$0x1]
    %67 = vrot.lane.b32.xlu0 %v66, 40
    %v68 = vpop.permute.xlu0 %67
    %vm69 = vcmask 392512
    %70 = vst.msk [vmem:[#allocation0] sm:$0x1] %vm69, %v68
    %s71 = scalar_lea.vmem %s0, 4
    %v72 = vld [vmem:[%s71] sm:$0x1]
    %73 = vrot.lane.b32.xlu0 %v72, 32
    %v74 = vpop.permute.xlu0 %73
    %vm75 = vcmask 326912
    %76 = vst.msk [vmem:[#allocation0] sm:$0x1] %vm75, %v74
    %s77 = scalar_lea.vmem %s0, 3
    %v78 = vld [vmem:[%s77] sm:$0x1]
    %79 = vrot.lane.b32.xlu0 %v78, 24
    %v80 = vpop.permute.xlu0 %79
    %vm81 = vcmask 261312
    %82 = vst.msk [vmem:[#allocation0] sm:$0x1] %vm81, %v80
    %s83 = scalar_lea.vmem %s0, 2
    %v84 = vld [vmem:[%s83] sm:$0x1]
    %85 = vrot.lane.b32.xlu0 %v84, 16
    %v86 = vpop.permute.xlu0 %85
    %vm87 = vcmask 195712
    %88 = vst.msk [vmem:[#allocation0] sm:$0x1] %vm87, %v86
    %s89 = scalar_lea.vmem %s0, 1
    %v90 = vld [vmem:[%s89] sm:$0x1]
    %91 = vrot.lane.b32.xlu0 %v90, 8
    %v92 = vpop.permute.xlu0 %91
    %vm93 = vcmask 130112
    %94 = vst.msk [vmem:[#allocation0] sm:$0x1] %vm93, %v92
    %s96 = ssub.s32 2, 1
    %v97 = vld [vmem:[#allocation0] sm:%s96]
    %s99 = ssub.s32 2, 1
    %100 = vst [vmem:[%s1] sm:%s99] %v97

// kernel: conv_block.2
$region0: #{conv_block.2}
  #allocation0 [shape = 'u32[]', space=smem, size = 0x4, offset = 0x4, fixed_abs, tag = 'smem constant byte address 0x4 - core index']
  #allocation1 [shape = 'u32[72,128]{1,0:T(1,128)}', space=vmem, size = 0x9000, scoped, tag = 'internal scratch']
  #allocation2 [shape = 'f32[18,64]{1,0:T(8,128)}', space=vmem, size = 0x3000, scoped, tag = 'scratch operand']
  %s0 = inlined_call_operand.vmem [shape: f32[2,16,64], index: 0, kind: input, shape index: {}]
  %s1 = inlined_call_operand.vmem [shape: f32[3,64,128], index: 1, kind: input, shape index: {}]
  %s2 = inlined_call_operand.vmem [shape: f32[2,16,128], index: 2, kind: output, shape index: {0}]
  %s3 = inlined_call_operand.vmem [shape: f32[2,2,128], index: 3, kind: output, shape index: {1}]
  %4 = xla_tuple %s2, %s3
  %s5 = sld [smem:[#allocation0]]
  $region49: #{conv_block.2} parent=0
    _
  %s7 = ssub.s32 1, %s5
  %s8 = scalar_select 0, %s7, %s5
  loop: start=0, step=1, limit=4
  $region2: #{conv_block.2} parent=0 // loop_pre_header
    _
  $region3: #{conv_block.2} parent=0 // loop_header
    %s10 = sphi 0, %s14
    %p11 = scmp.ge.s32.totalorder %s10, 4
    %s20 = sphi 0, %s22
    %s23 = sphi 0, %s20
    %s24 = sphi 0, %s23
    %s40 = sphi 0, %s24
    %s44 = sphi 0, %s44
    %s46 = sphi 0, %s44
    %s47 = sphi 0, %s46
    %s61 = sphi 0, %s47
    %s67 = sphi 0, %s69
    %s70 = sphi 0, %s67
    %s71 = sphi 0, %s70
    %s87 = sphi 0, %s71
    %s93 = sphi 0, %s95
    %s96 = sphi 0, %s93
    %s97 = sphi 0, %s96
    %s113 = sphi 0, %s97
  $region4: #{conv_block.2} parent=0 // loop_header_branch
    %13 = sbr.rel (%p11) target = $region8
  $region5: #{conv_block.2} parent=0 // loop_body
    %s15 = ssub.s32 %s10, 1
    %s16 = ssub.s32 %s10, 2
    %s17 = sadd.s32 %s10, 1
    %s18 = ssub.s32 %s10, %s17
    %p19 = scmp.eq.s32.totalorder %s18, 0
    %s21 = sadd.s32 %s20, 1
    %s22 = scalar_select %p19, %s20, %s21
    %p25 = pneg %p19
    %p26 = scmp.eq.s32.totalorder %s10, 1
    %p27 = por %p25, %p26
    %p28 = scmp.ne.s32.totalorder %s20, %s23
    %p29 = scmp.eq.s32.totalorder %s10, 0
    %p30 = por %p28, %p29
    %p31 = scmp.ne.s32.totalorder %s20, %s23
    %p32 = scmp.eq.s32.totalorder %s15, 1
    %p33 = por %p31, %p32
    %p34 = scmp.ne.s32.totalorder %s23, %s24
    %p35 = scmp.eq.s32.totalorder %s15, 0
    %p36 = por %p34, %p35
    %p37 = scmp.ne.s32.totalorder %s23, %s24
    %p38 = scmp.eq.s32.totalorder %s16, 1
    %p39 = por %p37, %p38
    %p41 = scmp.ne.s32.totalorder %s24, %s40
    %p42 = scmp.eq.s32.totalorder %s16, 0
    %p43 = por %p41, %p42
    %s45 = sadd.s32 %s44, 1
    %p48 = scmp.eq.s32.totalorder %s10, 1
    %p49 = scmp.ne.s32.totalorder %s44, %s46
    %p50 = scmp.eq.s32.totalorder %s10, 0
    %p51 = por %p49, %p50
    %p52 = scmp.ne.s32.totalorder %s44, %s46
    %p53 = scmp.eq.s32.totalorder %s15, 1
    %p54 = por %p52, %p53
    %p55 = scmp.ne.s32.totalorder %s46, %s47
    %p56 = scmp.eq.s32.totalorder %s15, 0
    %p57 = por %p55, %p56
    %p58 = scmp.ne.s32.totalorder %s46, %s47
    %p59 = scmp.eq.s32.totalorder %s16, 1
    %p60 = por %p58, %p59
    %p62 = scmp.ne.s32.totalorder %s47, %s61
    %p63 = scmp.eq.s32.totalorder %s16, 0
    %p64 = por %p62, %p63
    %s65 = ssub.s32 %s10, %s17
    %p66 = scmp.eq.s32.totalorder %s65, 0
    %s68 = sadd.s32 %s67, 1
    %s69 = scalar_select %p66, %s67, %s68
    %p72 = pneg %p66
    %p73 = scmp.eq.s32.totalorder %s10, 1
    %p74 = por %p72, %p73
    %p75 = scmp.ne.s32.totalorder %s67, %s70
    %p76 = scmp.eq.s32.totalorder %s10, 0
    %p77 = por %p75, %p76
    %p78 = scmp.ne.s32.totalorder %s67, %s70
    %p79 = scmp.eq.s32.totalorder %s15, 1
    %p80 = por %p78, %p79
    %p81 = scmp.ne.s32.totalorder %s70, %s71
    %p82 = scmp.eq.s32.totalorder %s15, 0
    %p83 = por %p81, %p82
    %p84 = scmp.ne.s32.totalorder %s70, %s71
    %p85 = scmp.eq.s32.totalorder %s16, 1
    %p86 = por %p84, %p85
    %p88 = scmp.ne.s32.totalorder %s71, %s87
    %p89 = scmp.eq.s32.totalorder %s16, 0
    %p90 = por %p88, %p89
    %s91 = ssub.s32 %s10, %s17
    %p92 = scmp.eq.s32.totalorder %s91, 0
    %s94 = sadd.s32 %s93, 1
    %s95 = scalar_select %p92, %s93, %s94
    %p98 = pneg %p92
    %p99 = scmp.eq.s32.totalorder %s10, 1
    %p100 = por %p98, %p99
    %p101 = scmp.ne.s32.totalorder %s93, %s96
    %p102 = scmp.eq.s32.totalorder %s10, 0
    %p103 = por %p101, %p102
    %p104 = scmp.ne.s32.totalorder %s93, %s96
    %p105 = scmp.eq.s32.totalorder %s15, 1
    %p106 = por %p104, %p105
    %p107 = scmp.ne.s32.totalorder %s96, %s97
    %p108 = scmp.eq.s32.totalorder %s15, 0
    %p109 = por %p107, %p108
    %p110 = scmp.ne.s32.totalorder %s96, %s97
    %p111 = scmp.eq.s32.totalorder %s16, 1
    %p112 = por %p110, %p111
    %p114 = scmp.ne.s32.totalorder %s97, %s113
    %p115 = scmp.eq.s32.totalorder %s16, 0
    %p116 = por %p114, %p115
    %p117 = scmp.le.s32.totalorder 1, %s10
    %p118 = scmp.lt.s32.totalorder %s10, 3
    %p119 = pnand %p117, %p118
    %p120 = pneg %p119
    // Predicated region
    $region9: #{conv_block.2} parent=5 // pred_check
      _
    $region10: #{conv_block.2} parent=5 // pred_check_branch
      %122 = sbr.rel (%p119) target = $region12
    $region11: #{conv_block.2} parent=5 // pred_region
      %s123 = ssub.s32 %s10, 1
      // Predicated region
      $region13: #{conv_block.2} parent=11 // pred_check
        %p124 = pneg %p57
      $region14: #{conv_block.2} parent=11 // pred_check_branch
        %126 = sbr.rel (%p124) target = $region16
      $region15: #{conv_block.2} parent=11 // pred_region
        _
      $region16: #{conv_block.2} parent=11 // pred_fallthru
        _
    $region12: #{conv_block.2} parent=5 // pred_fallthru
      _
    %p127 = scmp.lt.s32.totalorder %s10, 2
    // Predicated region
    $region17: #{conv_block.2} parent=5 // pred_check
      %p128 = pneg %p127
    $region18: #{conv_block.2} parent=5 // pred_check_branch
      %130 = sbr.rel (%p128) target = $region20
    $region19: #{conv_block.2} parent=5 // pred_region
      // Predicated region
      $region21: #{conv_block.2} parent=19 // pred_check
        %p131 = pneg %p30
      $region22: #{conv_block.2} parent=19 // pred_check_branch
        %133 = sbr.rel (%p131) target = $region24
      $region23: #{conv_block.2} parent=19 // pred_region
        %p134 = scmp.lt.s32.totalorder %s10, 1
        %s135 = scalar_select %p134, %s10, 1
        %s136 = smul.addr %s135, 2
        %s137 = smul.addr %s136, 8
        %s138 = scalar_lea.vmem %s0, %s137
      $region24: #{conv_block.2} parent=19 // pred_fallthru
        _
    $region20: #{conv_block.2} parent=5 // pred_fallthru
      _
    %p139 = scmp.le.s32.totalorder 1, %s10
    %p140 = scmp.lt.s32.totalorder %s10, 3
    %p141 = pnand %p139, %p140
    %p142 = pneg %p141
    // Predicated region
    $region25: #{conv_block.2} parent=5 // pred_check
      _
    $region26: #{conv_block.2} parent=5 // pred_check_branch
      %144 = sbr.rel (%p141) target = $region28
    $region27: #{conv_block.2} parent=5 // pred_region
      %s145 = ssub.s32 %s10, 1
      %p146 = scmp.lt.s32.totalorder %s15, 1
      %s147 = scalar_select %p146, %s15, 1
      %s148 = smul.addr %s147, 2
      %s149 = smul.addr %s148, 8
      %s150 = scalar_lea.vmem %s0, %s149
      %p151 = pneg %p36
      %p152 = pneg %p33
      %p153 = pneg %p57
      %p154 = pneg %p54
      %p155 = pneg %p83
      %p156 = pneg %p80
      %p157 = scmp.lt.s32.totalorder %s15, 1
      %s158 = scalar_select %p157, %s15, 1
      %s159 = smul.addr %s158, 2
      %s160 = smul.addr %s159, 8
      %s161 = scalar_lea.vmem %s2, %s160
      %p162 = pneg %p109
      %p163 = pneg %p106
      %p164 = scmp.lt.s32.totalorder %s15, 1
      %s165 = scalar_select %p164, %s15, 1
      %s166 = smul.addr %s165, 2
      %s167 = scalar_lea.vmem %s3, %s166
      %p168 = scmp.lt.s32.totalorder %s15, 1
      %s169 = scalar_select %p168, %s15, 1
      %s170 = smul.addr %s169, 2
      %s171 = smul.addr %s170, 8
      %s172 = scalar_lea.vmem %s0, %s171
      %p173 = scmp.lt.s32.totalorder %s15, 1
      %s174 = scalar_select %p173, %s15, 1
      %s175 = smul.addr %s174, 2
      %s176 = smul.addr %s175, 8
      %s177 = scalar_lea.vmem %s2, %s176
      %p178 = scmp.lt.s32.totalorder %s15, 1
      %s179 = scalar_select %p178, %s15, 1
      %s180 = smul.addr %s179, 2
      %s181 = scalar_lea.vmem %s3, %s180
      %vm182 = vcmask 516096
      %183 = vst.msk [vmem:[#allocation2] sm:$0x1] %vm182, 0.0
      %184 = vst.msk [vmem:[#allocation2 + $0x11] sm:$0x1] %vm182, 0.0
      %v185 = vld [vmem:[%s172] sm:$0xff]
      %v186 = vld [vmem:[%s172 + $0x8] sm:$0xff]
      %vm187 = vcmask 523264
      %188 = vst.msk [vmem:[#allocation2 + $0x1] sm:$0xff] %vm187, %v185
      %189 = vst.msk [vmem:[#allocation2 + $0x9] sm:$0xff] %vm187, %v186
      %v190 = vld [vmem:[#allocation2] sm:$0xff]
      %v191 = vld [vmem:[#allocation2 + $0x8] sm:$0xff]
      %v192 = vld [vmem:[%s1] sm:$0xff]
      %v193 = vld [vmem:[%s1 + $0x8] sm:$0xff]
      %v194 = vld [vmem:[%s1 + $0x10] sm:$0xff]
      %v195 = vld [vmem:[%s1 + $0x18] sm:$0xff]
      %v196 = vld [vmem:[%s1 + $0x20] sm:$0xff]
      %v197 = vld [vmem:[%s1 + $0x28] sm:$0xff]
      %v198 = vld [vmem:[%s1 + $0x30] sm:$0xff]
      %v199 = vld [vmem:[%s1 + $0x38] sm:$0xff]
      %v200 = vld [vmem:[#allocation2 + $0x1] sm:$0xff]
      %v201 = vld [vmem:[#allocation2 + $0x9] sm:$0xff]
      %s202 = scalar_lea.vmem %s1, 64
      %v203 = vld [vmem:[%s202] sm:$0xff]
      %v204 = vld [vmem:[%s202 + $0x8] sm:$0xff]
      %v205 = vld [vmem:[%s202 + $0x10] sm:$0xff]
      %v206 = vld [vmem:[%s202 + $0x18] sm:$0xff]
      %v207 = vld [vmem:[%s202 + $0x20] sm:$0xff]
      %v208 = vld [vmem:[%s202 + $0x28] sm:$0xff]
      %v209 = vld [vmem:[%s202 + $0x30] sm:$0xff]
      %v210 = vld [vmem:[%s202 + $0x38] sm:$0xff]
      %v212 = vsel %vm187, %v200, 0
      %v215 = vsel %vm187, %v201, 0
      %217 = vmatpush.msra.mxu0 0.0
      %218 = vmatpush.msra.mxu0 0.0
      %219 = vmatpush.msra.mxu0 0.0
      %220 = vmatpush.msra.mxu0 0.0
      %221 = vmatpush.msra.mxu0 0.0
      %222 = vmatpush.msra.mxu0 0.0
      %223 = vmatpush.msra.mxu0 0.0
      %224 = vmatpush.msra.mxu0 0.0
      %225 = vmatpush.msra.mxu0 %v210
      %226 = vmatpush.msra.mxu0 %v209
      %227 = vmatpush.msra.mxu0 %v208
      %228 = vmatpush.msra.mxu0 %v207
      %229 = vmatpush.msra.mxu0 %v206
      %230 = vmatpush.msra.mxu0 %v205
      %231 = vmatpush.msra.mxu0 %v204
      %232 = vmatpush.msra.mxu0 %v203
      %233 = vmatmul.f32.gmra.mxu0 %v212
      %v234 = vpop.f32.mrf.mxu0
      %v235 = vadd.f32 0.0, %v234
      %236 = vmatmul.f32.gmra.mxu0 %v215
      %v237 = vpop.f32.mrf.mxu0
      %v238 = vadd.f32 0.0, %v237
      %239 = vdwg.mxu0
      %v241 = vsel %vm187, %v190, 0
      %v244 = vsel %vm187, %v191, 0
      %246 = vmatpush.msra.mxu0 0.0
      %247 = vmatpush.msra.mxu0 0.0
      %248 = vmatpush.msra.mxu0 0.0
      %249 = vmatpush.msra.mxu0 0.0
      %250 = vmatpush.msra.mxu0 0.0
      %251 = vmatpush.msra.mxu0 0.0
      %252 = vmatpush.msra.mxu0 0.0
      %253 = vmatpush.msra.mxu0 0.0
      %254 = vmatpush.msra.mxu0 %v199
      %255 = vmatpush.msra.mxu0 %v198
      %256 = vmatpush.msra.mxu0 %v197
      %257 = vmatpush.msra.mxu0 %v196
      %258 = vmatpush.msra.mxu0 %v195
      %259 = vmatpush.msra.mxu0 %v194
      %260 = vmatpush.msra.mxu0 %v193
      %261 = vmatpush.msra.mxu0 %v192
      %262 = vmatmul.f32.gmra.mxu0 %v241
      %v263 = vpop.f32.mrf.mxu0
      %v264 = vadd.f32 %v235, %v263
      %265 = vmatmul.f32.gmra.mxu0 %v244
      %v266 = vpop.f32.mrf.mxu0
      %v267 = vadd.f32 %v238, %v266
      %268 = vdwg.mxu0
      %v269 = vld [vmem:[#allocation2 + $0x2] sm:$0xff]
      %v270 = vld [vmem:[#allocation2 + $0xa] sm:$0xff]
      %s271 = scalar_lea.vmem %s1, 128
      %v272 = vld [vmem:[%s271] sm:$0xff]
      %v273 = vld [vmem:[%s271 + $0x8] sm:$0xff]
      %v274 = vld [vmem:[%s271 + $0x10] sm:$0xff]
      %v275 = vld [vmem:[%s271 + $0x18] sm:$0xff]
      %v276 = vld [vmem:[%s271 + $0x20] sm:$0xff]
      %v277 = vld [vmem:[%s271 + $0x28] sm:$0xff]
      %v278 = vld [vmem:[%s271 + $0x30] sm:$0xff]
      %v279 = vld [vmem:[%s271 + $0x38] sm:$0xff]
      %v281 = vsel %vm187, %v269, 0
      %v284 = vsel %vm187, %v270, 0
      %286 = vmatpush.msra.mxu0 0.0
      %287 = vmatpush.msra.mxu0 0.0
      %288 = vmatpush.msra.mxu0 0.0
      %289 = vmatpush.msra.mxu0 0.0
      %290 = vmatpush.msra.mxu0 0.0
      %291 = vmatpush.msra.mxu0 0.0
      %292 = vmatpush.msra.mxu0 0.0
      %293 = vmatpush.msra.mxu0 0.0
      %294 = vmatpush.msra.mxu0 %v279
      %295 = vmatpush.msra.mxu0 %v278
      %296 = vmatpush.msra.mxu0 %v277
      %297 = vmatpush.msra.mxu0 %v276
      %298 = vmatpush.msra.mxu0 %v275
      %299 = vmatpush.msra.mxu0 %v274
      %300 = vmatpush.msra.mxu0 %v273
      %301 = vmatpush.msra.mxu0 %v272
      %302 = vmatmul.f32.gmra.mxu0 %v281
      %v303 = vpop.f32.mrf.mxu0
      %v304 = vadd.f32 0.0, %v303
      %305 = vmatmul.f32.gmra.mxu0 %v284
      %v306 = vpop.f32.mrf.mxu0
      %v307 = vadd.f32 0.0, %v306
      %308 = vdwg.mxu0
      %v309 = vadd.f32 %v264, %v304
      %v310 = vadd.f32 %v267, %v307
      %311 = vst [vmem:[%s177] sm:$0xff] %v309
      %312 = vst [vmem:[%s177 + $0x8] sm:$0xff] %v310
      %v313 = vadd.f32 %v309, %v310
      %v314 = vrot.slane %v313, 4
      %v315 = vadd.f32 %v313, %v314
      %v316 = vrot.slane %v315, 2
      %v317 = vadd.f32 %v315, %v316
      %v318 = vrot.slane %v317, 1
      %v319 = vadd.f32 %v317, %v318
      %320 = vst [vmem:[%s181] sm:$0x1] %v319
      %v321 = vmul.f32 %v309, %v309
      %v322 = vmul.f32 %v310, %v310
      %v323 = vadd.f32 %v321, %v322
      %v324 = vrot.slane %v323, 4
      %v325 = vadd.f32 %v323, %v324
      %v326 = vrot.slane %v325, 2
      %v327 = vadd.f32 %v325, %v326
      %v328 = vrot.slane %v327, 1
      %v329 = vadd.f32 %v327, %v328
      %330 = vst [vmem:[%s181 + $0x1] sm:$0x1] %v329
      %p331 = scmp.lt.s32.totalorder %s15, 1
      %s332 = scalar_select %p331, %s15, 1
      %s333 = smul.addr %s332, 2
      %s334 = smul.addr %s333, 8
      %s335 = scalar_lea.vmem %s2, %s334
      %p336 = scmp.lt.s32.totalorder %s15, 1
      %s337 = scalar_select %p336, %s15, 1
      %s338 = smul.addr %s337, 2
      %s339 = scalar_lea.vmem %s3, %s338
      // Predicated region
      $region29: #{conv_block.2} parent=27 // pred_check
        %p340 = pneg %p80
      $region30: #{conv_block.2} parent=27 // pred_check_branch
        %342 = sbr.rel (%p340) target = $region32
      $region31: #{conv_block.2} parent=27 // pred_region
        _
      $region32: #{conv_block.2} parent=27 // pred_fallthru
        _
      // Predicated region
      $region33: #{conv_block.2} parent=27 // pred_check
        %p343 = pneg %p106
      $region34: #{conv_block.2} parent=27 // pred_check_branch
        %345 = sbr.rel (%p343) target = $region36
      $region35: #{conv_block.2} parent=27 // pred_region
        _
      $region36: #{conv_block.2} parent=27 // pred_fallthru
        _
    $region28: #{conv_block.2} parent=5 // pred_fallthru
      _
    %p346 = scmp.le.s32.totalorder 2, %s10
    // Predicated region
    $region37: #{conv_block.2} parent=5 // pred_check
      %p347 = pneg %p346
    $region38: #{conv_block.2} parent=5 // pred_check_branch
      %349 = sbr.rel (%p347) target = $region40
    $region39: #{conv_block.2} parent=5 // pred_region
      %s350 = ssub.s32 %s10, 2
      // Predicated region
      $region41: #{conv_block.2} parent=39 // pred_check
        %p351 = pneg %p86
      $region42: #{conv_block.2} parent=39 // pred_check_branch
        %353 = sbr.rel (%p351) target = $region44
      $region43: #{conv_block.2} parent=39 // pred_region
        %p354 = scmp.lt.s32.totalorder %s16, 1
        %s355 = scalar_select %p354, %s16, 1
        %s356 = smul.addr %s355, 2
        %s357 = smul.addr %s356, 8
        %s358 = scalar_lea.vmem %s2, %s357
      $region44: #{conv_block.2} parent=39 // pred_fallthru
        _
      // Predicated region
      $region45: #{conv_block.2} parent=39 // pred_check
        %p359 = pneg %p112
      $region46: #{conv_block.2} parent=39 // pred_check_branch
        %361 = sbr.rel (%p359) target = $region48
      $region47: #{conv_block.2} parent=39 // pred_region
        %p362 = scmp.lt.s32.totalorder %s16, 1
        %s363 = scalar_select %p362, %s16, 1
        %s364 = smul.addr %s363, 2
        %s365 = scalar_lea.vmem %s3, %s364
      $region48: #{conv_block.2} parent=39 // pred_fallthru
        _
    $region40: #{conv_block.2} parent=5 // pred_fallthru
      _
  $region6: #{conv_block.2} parent=0 // loop_footer
    %s14 = sadd.s32 1, %s10
  $region7: #{conv_block.2} parent=0 // loop_footer_branch
    %9 = sbr.rel target = $region3
  $region8: #{conv_block.2} parent=0 // loop_exit
    _

// kernel: conv_block.3
$region0: #{conv_block.3}
  #allocation0 [shape = 'u32[]', space=smem, size = 0x4, offset = 0x4, fixed_abs, tag = 'smem constant byte address 0x4 - core index']
  #allocation1 [shape = 'u32[72,128]{1,0:T(1,128)}', space=vmem, size = 0x9000, scoped, tag = 'internal scratch']
  %s0 = inlined_call_operand.vmem [shape: f32[2,16,128], index: 0, kind: input, shape index: {}]
  %s1 = inlined_call_operand.vmem [shape: f32[2,128], index: 1, kind: input, shape index: {}]
  %s2 = inlined_call_operand.vmem [shape: f32[2,16,128], index: 2, kind: output, shape index: {}]
  %s3 = sld [smem:[#allocation0]]
  $region41: #{conv_block.3} parent=0
    _
  %s5 = ssub.s32 1, %s3
  %s6 = scalar_select 0, %s5, %s3
  loop: start=0, step=1, limit=4
  $region2: #{conv_block.3} parent=0 // loop_pre_header
    _
  $region3: #{conv_block.3} parent=0 // loop_header
    %s8 = sphi 0, %s12
    %p9 = scmp.ge.s32.totalorder %s8, 4
    %s18 = sphi 0, %s20
    %s21 = sphi 0, %s18
    %s22 = sphi 0, %s21
    %s38 = sphi 0, %s22
    %s42 = sphi 0, %s42
    %s44 = sphi 0, %s42
    %s45 = sphi 0, %s44
    %s59 = sphi 0, %s45
    %s65 = sphi 0, %s67
    %s68 = sphi 0, %s65
    %s69 = sphi 0, %s68
    %s85 = sphi 0, %s69
  $region4: #{conv_block.3} parent=0 // loop_header_branch
    %11 = sbr.rel (%p9) target = $region8
  $region5: #{conv_block.3} parent=0 // loop_body
    %s13 = ssub.s32 %s8, 1
    %s14 = ssub.s32 %s8, 2
    %s15 = sadd.s32 %s8, 1
    %s16 = ssub.s32 %s8, %s15
    %p17 = scmp.eq.s32.totalorder %s16, 0
    %s19 = sadd.s32 %s18, 1
    %s20 = scalar_select %p17, %s18, %s19
    %p23 = pneg %p17
    %p24 = scmp.eq.s32.totalorder %s8, 1
    %p25 = por %p23, %p24
    %p26 = scmp.ne.s32.totalorder %s18, %s21
    %p27 = scmp.eq.s32.totalorder %s8, 0
    %p28 = por %p26, %p27
    %p29 = scmp.ne.s32.totalorder %s18, %s21
    %p30 = scmp.eq.s32.totalorder %s13, 1
    %p31 = por %p29, %p30
    %p32 = scmp.ne.s32.totalorder %s21, %s22
    %p33 = scmp.eq.s32.totalorder %s13, 0
    %p34 = por %p32, %p33
    %p35 = scmp.ne.s32.totalorder %s21, %s22
    %p36 = scmp.eq.s32.totalorder %s14, 1
    %p37 = por %p35, %p36
    %p39 = scmp.ne.s32.totalorder %s22, %s38
    %p40 = scmp.eq.s32.totalorder %s14, 0
    %p41 = por %p39, %p40
    %s43 = sadd.s32 %s42, 1
    %p46 = scmp.eq.s32.totalorder %s8, 1
    %p47 = scmp.ne.s32.totalorder %s42, %s44
    %p48 = scmp.eq.s32.totalorder %s8, 0
    %p49 = por %p47, %p48
    %p50 = scmp.ne.s32.totalorder %s42, %s44
    %p51 = scmp.eq.s32.totalorder %s13, 1
    %p52 = por %p50, %p51
    %p53 = scmp.ne.s32.totalorder %s44, %s45
    %p54 = scmp.eq.s32.totalorder %s13, 0
    %p55 = por %p53, %p54
    %p56 = scmp.ne.s32.totalorder %s44, %s45
    %p57 = scmp.eq.s32.totalorder %s14, 1
    %p58 = por %p56, %p57
    %p60 = scmp.ne.s32.totalorder %s45, %s59
    %p61 = scmp.eq.s32.totalorder %s14, 0
    %p62 = por %p60, %p61
    %s63 = ssub.s32 %s8, %s15
    %p64 = scmp.eq.s32.totalorder %s63, 0
    %s66 = sadd.s32 %s65, 1
    %s67 = scalar_select %p64, %s65, %s66
    %p70 = pneg %p64
    %p71 = scmp.eq.s32.totalorder %s8, 1
    %p72 = por %p70, %p71
    %p73 = scmp.ne.s32.totalorder %s65, %s68
    %p74 = scmp.eq.s32.totalorder %s8, 0
    %p75 = por %p73, %p74
    %p76 = scmp.ne.s32.totalorder %s65, %s68
    %p77 = scmp.eq.s32.totalorder %s13, 1
    %p78 = por %p76, %p77
    %p79 = scmp.ne.s32.totalorder %s68, %s69
    %p80 = scmp.eq.s32.totalorder %s13, 0
    %p81 = por %p79, %p80
    %p82 = scmp.ne.s32.totalorder %s68, %s69
    %p83 = scmp.eq.s32.totalorder %s14, 1
    %p84 = por %p82, %p83
    %p86 = scmp.ne.s32.totalorder %s69, %s85
    %p87 = scmp.eq.s32.totalorder %s14, 0
    %p88 = por %p86, %p87
    %p89 = scmp.le.s32.totalorder 1, %s8
    %p90 = scmp.lt.s32.totalorder %s8, 3
    %p91 = pnand %p89, %p90
    %p92 = pneg %p91
    // Predicated region
    $region9: #{conv_block.3} parent=5 // pred_check
      _
    $region10: #{conv_block.3} parent=5 // pred_check_branch
      %94 = sbr.rel (%p91) target = $region12
    $region11: #{conv_block.3} parent=5 // pred_region
      %s95 = ssub.s32 %s8, 1
      // Predicated region
      $region13: #{conv_block.3} parent=11 // pred_check
        %p96 = pneg %p55
      $region14: #{conv_block.3} parent=11 // pred_check_branch
        %98 = sbr.rel (%p96) target = $region16
      $region15: #{conv_block.3} parent=11 // pred_region
        _
      $region16: #{conv_block.3} parent=11 // pred_fallthru
        _
    $region12: #{conv_block.3} parent=5 // pred_fallthru
      _
    %p99 = scmp.lt.s32.totalorder %s8, 2
    // Predicated region
    $region17: #{conv_block.3} parent=5 // pred_check
      %p100 = pneg %p99
    $region18: #{conv_block.3} parent=5 // pred_check_branch
      %102 = sbr.rel (%p100) target = $region20
    $region19: #{conv_block.3} parent=5 // pred_region
      // Predicated region
      $region21: #{conv_block.3} parent=19 // pred_check
        %p103 = pneg %p28
      $region22: #{conv_block.3} parent=19 // pred_check_branch
        %105 = sbr.rel (%p103) target = $region24
      $region23: #{conv_block.3} parent=19 // pred_region
        %p106 = scmp.lt.s32.totalorder %s8, 1
        %s107 = scalar_select %p106, %s8, 1
        %s108 = smul.addr %s107, 2
        %s109 = smul.addr %s108, 8
        %s110 = scalar_lea.vmem %s0, %s109
      $region24: #{conv_block.3} parent=19 // pred_fallthru
        _
    $region20: #{conv_block.3} parent=5 // pred_fallthru
      _
    %p111 = scmp.le.s32.totalorder 1, %s8
    %p112 = scmp.lt.s32.totalorder %s8, 3
    %p113 = pnand %p111, %p112
    %p114 = pneg %p113
    // Predicated region
    $region25: #{conv_block.3} parent=5 // pred_check
      _
    $region26: #{conv_block.3} parent=5 // pred_check_branch
      %116 = sbr.rel (%p113) target = $region28
    $region27: #{conv_block.3} parent=5 // pred_region
      %s117 = ssub.s32 %s8, 1
      %p118 = scmp.lt.s32.totalorder %s13, 1
      %s119 = scalar_select %p118, %s13, 1
      %s120 = smul.addr %s119, 2
      %s121 = smul.addr %s120, 8
      %s122 = scalar_lea.vmem %s0, %s121
      %p123 = pneg %p34
      %p124 = pneg %p31
      %p125 = pneg %p55
      %p126 = pneg %p52
      %p127 = pneg %p81
      %p128 = pneg %p78
      %p129 = scmp.lt.s32.totalorder %s13, 1
      %s130 = scalar_select %p129, %s13, 1
      %s131 = smul.addr %s130, 2
      %s132 = smul.addr %s131, 8
      %s133 = scalar_lea.vmem %s2, %s132
      %p134 = scmp.lt.s32.totalorder %s13, 1
      %s135 = scalar_select %p134, %s13, 1
      %s136 = smul.addr %s135, 2
      %s137 = smul.addr %s136, 8
      %s138 = scalar_lea.vmem %s0, %s137
      %p139 = scmp.lt.s32.totalorder %s13, 1
      %s140 = scalar_select %p139, %s13, 1
      %s141 = smul.addr %s140, 2
      %s142 = smul.addr %s141, 8
      %s143 = scalar_lea.vmem %s2, %s142
      %v144 = vld [vmem:[%s138] sm:$0xff]
      %v145 = vld [vmem:[%s138 + $0x8] sm:$0xff]
      %v146 = vld [vmem:[%s1] sm:$0x1]
      %v147 = vperm.slane %v146, 0
      %v148 = vmul.f32 %v144, %v147
      %v149 = vmul.f32 %v145, %v147
      %v150 = vld [vmem:[%s1 + $0x1] sm:$0x1]
      %v151 = vperm.slane %v150, 0
      %v152 = vadd.f32 %v148, %v151
      %v153 = vadd.f32 %v149, %v151
      %v154 = vmax.f32 %v152, 0.0
      %v155 = vmax.f32 %v153, 0.0
      %156 = vst [vmem:[%s143] sm:$0xff] %v154
      %157 = vst [vmem:[%s143 + $0x8] sm:$0xff] %v155
      %p158 = scmp.lt.s32.totalorder %s13, 1
      %s159 = scalar_select %p158, %s13, 1
      %s160 = smul.addr %s159, 2
      %s161 = smul.addr %s160, 8
      %s162 = scalar_lea.vmem %s2, %s161
      // Predicated region
      $region29: #{conv_block.3} parent=27 // pred_check
        %p163 = pneg %p78
      $region30: #{conv_block.3} parent=27 // pred_check_branch
        %165 = sbr.rel (%p163) target = $region32
      $region31: #{conv_block.3} parent=27 // pred_region
        _
      $region32: #{conv_block.3} parent=27 // pred_fallthru
        _
    $region28: #{conv_block.3} parent=5 // pred_fallthru
      _
    %p166 = scmp.le.s32.totalorder 2, %s8
    // Predicated region
    $region33: #{conv_block.3} parent=5 // pred_check
      %p167 = pneg %p166
    $region34: #{conv_block.3} parent=5 // pred_check_branch
      %169 = sbr.rel (%p167) target = $region36
    $region35: #{conv_block.3} parent=5 // pred_region
      %s170 = ssub.s32 %s8, 2
      // Predicated region
      $region37: #{conv_block.3} parent=35 // pred_check
        %p171 = pneg %p84
      $region38: #{conv_block.3} parent=35 // pred_check_branch
        %173 = sbr.rel (%p171) target = $region40
      $region39: #{conv_block.3} parent=35 // pred_region
        %p174 = scmp.lt.s32.totalorder %s14, 1
        %s175 = scalar_select %p174, %s14, 1
        %s176 = smul.addr %s175, 2
        %s177 = smul.addr %s176, 8
        %s178 = scalar_lea.vmem %s2, %s177
      $region40: #{conv_block.3} parent=35 // pred_fallthru
        _
    $region36: #{conv_block.3} parent=5 // pred_fallthru
      _
  $region6: #{conv_block.3} parent=0 // loop_footer
    %s12 = sadd.s32 1, %s8
  $region7: #{conv_block.3} parent=0 // loop_footer_branch
    %7 = sbr.rel target = $region3
  $region8: #{conv_block.3} parent=0 // loop_exit
    _

</llo_original>
